<compile_context>
chip_gen: v7x
topology: tpu7x:2x2x1
jax: 0.10.0
libtpu: 0.0.40
codegen_flags: <defaults>
</compile_context>

<pallas_src>
import functools

import jax
import jax.numpy as jnp
from jax.experimental import pallas as pl
from jax.experimental.pallas import tpu as pltpu

LANES = 128
TILE_ROWS = 4096  # 2 MiB / f32 input block; sweet spot across v5e/v6e/v7x


def _focal_kernel(pred_ref, gt_ref, loss_ref, npos_ref, *,
                  tile_rows, total_rows, needs_row_mask):
    i = pl.program_id(0)

    pred = pred_ref[...].astype(jnp.float32)
    gt = gt_ref[...].astype(jnp.float32)

    is_pos = gt == 1.0
    is_neg = gt < 1.0  # kept for exact _neg_loss semantics (gt > 1 contributes 0)

    p = jnp.clip(pred, 1e-9, 1.0 - 1e-9)   # matches torch.clamp in _neg_loss
    one_m_p = 1.0 - p

    # Single transcendental per element: pos/neg branches are exclusive.
    log_t = jnp.log(jnp.where(is_pos, p, one_m_p))
    base = jnp.where(is_pos, one_m_p, p)
    gt_w = 1.0 - gt
    gt_w = gt_w * gt_w
    gt_w = gt_w * gt_w                      # (1 - gt)^4
    tail_w = jnp.where(is_pos, 1.0, gt_w * is_neg.astype(jnp.float32))
    contrib = log_t * (base * base) * tail_w   # pos_loss + neg_loss per element
    npos = is_pos.astype(jnp.float32)

    groups = tile_rows // 8

    def write(c, n):
        # Sublane-group tree reduce: pure VALU vreg adds, no scratch RMW.
        loss_ref[0] = c.reshape(groups, 8, LANES).sum(axis=0)
        npos_ref[0] = n.reshape(groups, 8, LANES).sum(axis=0)

    if needs_row_mask:
        # Only the (partial) last block needs row masking; keep the iota /
        # compare / selects off the hot path of all other blocks.
        is_last = i == pl.num_programs(0) - 1

        @pl.when(is_last)
        def _masked():
            row = jax.lax.broadcasted_iota(jnp.int32, contrib.shape, 0)
            valid = (i * tile_rows + row) < total_rows
            write(jnp.where(valid, contrib, 0.0), jnp.where(valid, npos, 0.0))

        @pl.when(jnp.logical_not(is_last))
        def _unmasked():
            write(contrib, npos)
    else:
        write(contrib, npos)


def _tail_sums(pred, gt):
    """Pure-JAX loss/npos sums for a (<=127-element) lane tail."""
    pred = pred.astype(jnp.float32)
    gt = gt.astype(jnp.float32)
    pos = (gt == 1.0).astype(jnp.float32)
    neg = (gt < 1.0).astype(jnp.float32)
    p = jnp.clip(pred, 1e-9, 1.0 - 1e-9)
    pos_loss = jnp.log(p) * (1.0 - p) ** 2 * pos
    neg_loss = jnp.log(1.0 - p) * p * p * (1.0 - gt) ** 4 * neg
    return jnp.sum(pos_loss + neg_loss), jnp.sum(pos)


def focal_loss(pred, gt):
    """Pallas implementation of the CornerNet modified focal loss.

    pred, gt: (batch, c, h, w) arrays (any float dtype). Returns scalar f32.
    """
    assert pred.shape == gt.shape
    n = pred.size

    pred_flat = pred.reshape(-1)            # contiguous, free reshape
    gt_flat = gt.reshape(-1)

    rem = n % LANES
    main = n - rem
    rows = main // LANES

    if rem:
        # Handle the lane tail in plain JAX instead of concatenating padding
        # onto the full streams.
        tail_loss, tail_npos = _tail_sums(pred_flat[main:], gt_flat[main:])
    else:
        tail_loss = jnp.float32(0.0)
        tail_npos = jnp.float32(0.0)

    if rows:
        pred2d = (pred_flat[:main] if rem else pred_flat).reshape(rows, LANES)
        gt2d = (gt_flat[:main] if rem else gt_flat).reshape(rows, LANES)

        # Tile rows: big blocks for the streaming case, round small inputs up
        # to a sublane multiple (overhang rows are masked in-kernel).
        tile_rows = TILE_ROWS if rows >= TILE_ROWS else -(-rows // 8) * 8
        num_blocks = pl.cdiv(rows, tile_rows)
        needs_row_mask = (rows % tile_rows) != 0

        kernel = functools.partial(
            _focal_kernel,
            tile_rows=tile_rows,
            total_rows=rows,
            needs_row_mask=needs_row_mask,
        )

        in_spec = pl.BlockSpec((tile_rows, LANES), lambda i: (i, 0))
        out_spec = pl.BlockSpec((1, 8, LANES), lambda i: (i, 0, 0))

        loss_p, npos_p = pl.pallas_call(
            kernel,
            out_shape=(
                jax.ShapeDtypeStruct((num_blocks, 8, LANES), jnp.float32),
                jax.ShapeDtypeStruct((num_blocks, 8, LANES), jnp.float32),
            ),
            grid_spec=pltpu.PrefetchScalarGridSpec(
                num_scalar_prefetch=0,
                grid=(num_blocks,),
                in_specs=[in_spec, in_spec],
                out_specs=[out_spec, out_spec],
            ),
            compiler_params=pltpu.CompilerParams(
                # Independent per-block partials -> legally parallel; shards
                # the stream across both TensorCores on v7x, no-op on v5e/v6e.
                dimension_semantics=("parallel",),
                vmem_limit_bytes=32 * 1024 * 1024,
            ),
        )(pred2d, gt2d)

        loss_sum = jnp.sum(loss_p) + tail_loss
        num_pos = jnp.sum(npos_p) + tail_npos
    else:
        loss_sum = tail_loss
        num_pos = tail_npos

    # num_pos == 0 implies pos_loss == 0, so the PyTorch branch collapses.
    return -loss_sum / jnp.maximum(num_pos, 1.0)


def focal_loss_ref(pred, gt):
    """Pure-JAX reference matching the PyTorch _neg_loss semantics."""
    pred = pred.astype(jnp.float32)
    gt = gt.astype(jnp.float32)
    pos_inds = (gt == 1.0).astype(jnp.float32)
    neg_inds = (gt < 1.0).astype(jnp.float32)
    neg_weights = (1.0 - gt) ** 4
    p = jnp.clip(pred, 1e-9, 1.0 - 1e-9)
    pos_loss = jnp.sum(jnp.log(p) * (1.0 - p) ** 2 * pos_inds)
    neg_loss = jnp.sum(jnp.log(1.0 - p) * p * p * neg_weights * neg_inds)
    num_pos = jnp.sum(pos_inds)
    return jnp.where(num_pos == 0.0,
                     -neg_loss,
                     -(pos_loss + neg_loss) / jnp.maximum(num_pos, 1.0))


def _make_inputs(key, shape, with_peaks=True):
    k1, k2, k3 = jax.random.split(key, 3)
    pred = jax.nn.sigmoid(jax.random.normal(k1, shape, jnp.float32))
    gt = jax.random.uniform(k2, shape, jnp.float32) * 0.9
    if with_peaks:
        peak_mask = jax.random.uniform(k3, shape, jnp.float32) > 0.98
        gt = jnp.where(peak_mask, 1.0, gt)
    return pred, gt


if __name__ == "__main__":
    key = jax.random.PRNGKey(0)
    k_a, k_b, k_c, k_d, k_e = jax.random.split(key, 5)

    # 1) Small NCHW heatmap (single-block path, no masking).
    pred, gt = _make_inputs(k_a, (2, 4, 16, 16), with_peaks=True)
    out = jax.block_until_ready(focal_loss(pred, gt))
    ref = focal_loss_ref(pred, gt)
    assert jnp.allclose(out, ref, rtol=1e-4, atol=1e-5), (out, ref)

    # 2) num_pos == 0 branch.
    pred0, gt0 = _make_inputs(k_b, (2, 4, 16, 16), with_peaks=False)
    out0 = jax.block_until_ready(focal_loss(pred0, gt0))
    ref0 = focal_loss_ref(pred0, gt0)
    assert jnp.allclose(out0, ref0, rtol=1e-4, atol=1e-5), (out0, ref0)

    # 3) Multi-block grid with a partial last block (row-mask + parallel path).
    pred2, gt2 = _make_inputs(k_c, (2, 4, 256, 320), with_peaks=True)
    out2 = jax.block_until_ready(focal_loss(pred2, gt2))
    ref2 = focal_loss_ref(pred2, gt2)
    assert jnp.allclose(out2, ref2, rtol=1e-4, atol=1e-5), (out2, ref2)

    # 4) Element count not a multiple of 128 (JAX lane-tail path + tiny rows).
    pred3, gt3 = _make_inputs(k_d, (1, 3, 10, 11), with_peaks=True)
    out3 = jax.block_until_ready(focal_loss(pred3, gt3))
    ref3 = focal_loss_ref(pred3, gt3)
    assert jnp.allclose(out3, ref3, rtol=1e-4, atol=1e-5), (out3, ref3)

    # 5) Fewer than 128 elements (pure-JAX fallback path).
    pred4, gt4 = _make_inputs(k_e, (1, 1, 5, 5), with_peaks=True)
    out4 = jax.block_until_ready(focal_loss(pred4, gt4))
    ref4 = focal_loss_ref(pred4, gt4)
    assert jnp.allclose(out4, ref4, rtol=1e-4, atol=1e-5), (out4, ref4)

    print("KERNEL_OK")
</pallas_src>

<mosaic_0001>
module attributes {stable_mosaic.version = 11 : i64} {
  func.func @_focal_kernel(%arg0: i32, %arg1: memref<16x128xf32, #tpu.memory_space<vmem>>, %arg2: memref<16x128xf32, #tpu.memory_space<vmem>>, %arg3: memref<1x8x128xf32, #tpu.memory_space<vmem>>, %arg4: memref<1x8x128xf32, #tpu.memory_space<vmem>>) attributes {dimension_semantics = [#tpu.dimension_semantics<parallel>], iteration_bounds = array<i64: 1>, scalar_prefetch = 0 : i64, scratch_operands = 0 : i64, tpu.core_type = #tpu.core_type<tc>, window_params = [{transform_indices = @transform_0, window_bounds = array<i64: 16, 128>}, {transform_indices = @transform_1, window_bounds = array<i64: 16, 128>}, {transform_indices = @transform_2, window_bounds = array<i64: 1, 8, 128>}, {transform_indices = @transform_3, window_bounds = array<i64: 1, 8, 128>}]} {
    %c0 = arith.constant 0 : index
    %c0_0 = arith.constant 0 : index
    %0 = vector.load %arg1[%c0, %c0_0] : memref<16x128xf32, #tpu.memory_space<vmem>>, vector<16x128xf32>
    %c0_1 = arith.constant 0 : index
    %c0_2 = arith.constant 0 : index
    %1 = vector.load %arg2[%c0_1, %c0_2] : memref<16x128xf32, #tpu.memory_space<vmem>>, vector<16x128xf32>
    %cst = arith.constant 1.000000e+00 : f32
    %2 = vector.broadcast %cst : f32 to vector<16x128xf32>
    %3 = arith.cmpf oeq, %1, %2 : vector<16x128xf32>
    %cst_3 = arith.constant 1.000000e+00 : f32
    %4 = vector.broadcast %cst_3 : f32 to vector<16x128xf32>
    %5 = arith.cmpf olt, %1, %4 : vector<16x128xf32>
    %cst_4 = arith.constant 9.99999971E-10 : f32
    %cst_5 = arith.constant 1.000000e+00 : f32
    %6 = vector.broadcast %cst_4 : f32 to vector<16x128xf32>
    %7 = arith.maximumf %6, %0 : vector<16x128xf32>
    %8 = vector.broadcast %cst_5 : f32 to vector<16x128xf32>
    %9 = arith.minimumf %8, %7 : vector<16x128xf32>
    %cst_6 = arith.constant 1.000000e+00 : f32
    %10 = vector.broadcast %cst_6 : f32 to vector<16x128xf32>
    %11 = arith.subf %10, %9 : vector<16x128xf32>
    %12 = arith.select %3, %9, %11 : vector<16x128xi1>, vector<16x128xf32>
    %13 = math.log %12 : vector<16x128xf32>
    %14 = arith.select %3, %11, %9 : vector<16x128xi1>, vector<16x128xf32>
    %cst_7 = arith.constant 1.000000e+00 : f32
    %15 = vector.broadcast %cst_7 : f32 to vector<16x128xf32>
    %16 = arith.subf %15, %1 : vector<16x128xf32>
    %17 = arith.mulf %16, %16 : vector<16x128xf32>
    %18 = arith.mulf %17, %17 : vector<16x128xf32>
    %19 = arith.extui %5 : vector<16x128xi1> to vector<16x128xi32>
    %20 = arith.sitofp %19 : vector<16x128xi32> to vector<16x128xf32>
    %21 = arith.mulf %18, %20 : vector<16x128xf32>
    %cst_8 = arith.constant 1.000000e+00 : f32
    %22 = vector.broadcast %cst_8 : f32 to vector<16x128xf32>
    %23 = arith.select %3, %22, %21 : vector<16x128xi1>, vector<16x128xf32>
    %24 = arith.mulf %14, %14 : vector<16x128xf32>
    %25 = arith.mulf %13, %24 : vector<16x128xf32>
    %26 = arith.mulf %25, %23 : vector<16x128xf32>
    %27 = arith.extui %3 : vector<16x128xi1> to vector<16x128xi32>
    %28 = arith.sitofp %27 : vector<16x128xi32> to vector<16x128xf32>
    %29 = vector.shape_cast %26 : vector<16x128xf32> to vector<2x8x128xf32>
    %cst_9 = arith.constant dense<0.000000e+00> : vector<8x128xf32>
    %30 = vector.multi_reduction <add>, %29, %cst_9 [0] : vector<2x8x128xf32> to vector<8x128xf32>
    %c0_10 = arith.constant 0 : index
    %c0_11 = arith.constant 0 : index
    %c0_12 = arith.constant 0 : index
    %31 = vector.load %arg3[%c0_10, %c0_11, %c0_12] : memref<1x8x128xf32, #tpu.memory_space<vmem>>, vector<1x8x128xf32>
    %32 = vector.shape_cast %31 : vector<1x8x128xf32> to vector<8x128xf32>
    %33 = vector.shape_cast %30 : vector<8x128xf32> to vector<1x8x128xf32>
    tpu.vector_store %arg3[%c0_10, %c0_11, %c0_12], %33 {strides = array<i32>} : memref<1x8x128xf32, #tpu.memory_space<vmem>>, vector<1x8x128xf32>,
    %34 = vector.shape_cast %28 : vector<16x128xf32> to vector<2x8x128xf32>
    %cst_13 = arith.constant dense<0.000000e+00> : vector<8x128xf32>
    %35 = vector.multi_reduction <add>, %34, %cst_13 [0] : vector<2x8x128xf32> to vector<8x128xf32>
    %c0_14 = arith.constant 0 : index
    %c0_15 = arith.constant 0 : index
    %c0_16 = arith.constant 0 : index
    %36 = vector.load %arg4[%c0_14, %c0_15, %c0_16] : memref<1x8x128xf32, #tpu.memory_space<vmem>>, vector<1x8x128xf32>
    %37 = vector.shape_cast %36 : vector<1x8x128xf32> to vector<8x128xf32>
    %38 = vector.shape_cast %35 : vector<8x128xf32> to vector<1x8x128xf32>
    tpu.vector_store %arg4[%c0_14, %c0_15, %c0_16], %38 {strides = array<i32>} : memref<1x8x128xf32, #tpu.memory_space<vmem>>, vector<1x8x128xf32>,
    return
  }
  func.func @transform_0(%arg0: i32) -> (i32, i32) {
    %c0_i32 = arith.constant 0 : i32
    %c0_i32_0 = arith.constant 0 : i32
    return %arg0, %c0_i32 : i32, i32
  }
  func.func @transform_1(%arg0: i32) -> (i32, i32) {
    %c0_i32 = arith.constant 0 : i32
    %c0_i32_0 = arith.constant 0 : i32
    return %arg0, %c0_i32 : i32, i32
  }
  func.func @transform_2(%arg0: i32) -> (i32, i32, i32) {
    %c0_i32 = arith.constant 0 : i32
    %c0_i32_0 = arith.constant 0 : i32
    %c0_i32_1 = arith.constant 0 : i32
    return %arg0, %c0_i32, %c0_i32_0 : i32, i32, i32
  }
  func.func @transform_3(%arg0: i32) -> (i32, i32, i32) {
    %c0_i32 = arith.constant 0 : i32
    %c0_i32_0 = arith.constant 0 : i32
    %c0_i32_1 = arith.constant 0 : i32
    return %arg0, %c0_i32, %c0_i32_0 : i32, i32, i32
  }
}

</mosaic_0001>

<llo_original>
// kernel: tpu_custom_call.1
$region0: #{tpu_custom_call.1}
  #allocation0 [shape = 'u32[]', space=smem, size = 0x4, offset = 0x4, fixed_abs, tag = 'smem constant byte address 0x4 - core index']
  #allocation1 [shape = 'u32[144,128]{1,0:T(1,128)}', space=vmem, size = 0x12000, scoped, tag = 'internal scratch']
  %s0 = inlined_call_operand.hbm [shape: f32[16,128], index: 0, kind: input, shape index: {}]
  %s1 = inlined_call_operand.hbm [shape: f32[16,128], index: 1, kind: input, shape index: {}]
  %s2 = inlined_call_operand.hbm [shape: f32[1,8,128], index: 2, kind: output, shape index: {0}]
  %s3 = inlined_call_operand.hbm [shape: f32[1,8,128], index: 3, kind: output, shape index: {1}]
  %4 = xla_tuple %s2, %s3
  %s5 = sld [smem:[#allocation0]]
  $region34: #{tpu_custom_call.1} parent=0
    _
  %s7 = ssub.s32 1, %s5
  %s8 = scalar_select 0, %s7, %s5
  $region1: #{tpu_custom_call.1} parent=0
    #allocation2 [shape = 'u8[8192]{0}', space=vmem, size = 0x2000, scoped, tag = 'input window, operand 0, single buffered']
    #allocation3 [shape = 's32[1]{0}', space=sflag, size = 0x4, scoped, tag = 'scoped memory for tpu_custom_call.1']
    #allocation4 [shape = 's32[1]{0}', space=sflag, size = 0x4, scoped, tag = 'scoped memory for tpu_custom_call.1']
    #allocation5 [shape = 'u8[8192]{0}', space=vmem, size = 0x2000, scoped, tag = 'input window, operand 1, single buffered']
    #allocation6 [shape = 's32[1]{0}', space=sflag, size = 0x4, scoped, tag = 'scoped memory for tpu_custom_call.1']
    #allocation7 [shape = 'u8[4096]{0}', space=vmem, size = 0x1000, scoped, tag = 'output window, operand 0, single buffered']
    #allocation8 [shape = 'u8[4096]{0}', space=vmem, size = 0x1000, scoped, tag = 'output window, operand 1, single buffered']
    #allocation9 [shape = 's32[1]{0}', space=sflag, size = 0x4, scoped, tag = 'scoped memory for tpu_custom_call.1']
    %9 = vsyncpa [#allocation3], 0
    %10 = vsyncpa [#allocation6], 0
    %11 = vsyncpa [#allocation4], 0
    %12 = vsyncpa [#allocation9], 0
    // Predicated region
    $region2: #{tpu_custom_call.1} parent=1 // pred_check
      _
    $region3: #{tpu_custom_call.1} parent=1 // pred_check_branch
      %14 = sbr.rel (0) target = $region5
    $region4: #{tpu_custom_call.1} parent=1 // pred_region
      %s16 = ssub.s32 256, 256
      %17 = vsyncadd [#allocation3], %s16
      %s18 = sshll.u32 [#allocation2], 4
      %s19 = int_to_ptr.vmem [resolvable:$true] %s18
      %24 = dma.hbm_to_vmem [thread:$0]  %s0, 256, %s19, [#allocation3], 128, 128, 8
    $region5: #{tpu_custom_call.1} parent=1 // pred_fallthru
      _
    // Predicated region
    $region6: #{tpu_custom_call.1} parent=1 // pred_check
      _
    $region7: #{tpu_custom_call.1} parent=1 // pred_check_branch
      %26 = sbr.rel (0) target = $region9
    $region8: #{tpu_custom_call.1} parent=1 // pred_region
      %s28 = ssub.s32 256, 256
      %29 = vsyncadd [#allocation6], %s28
      %s30 = sshll.u32 [#allocation5], 4
      %s31 = int_to_ptr.vmem [resolvable:$true] %s30
      %36 = dma.hbm_to_vmem [thread:$0]  %s1, 256, %s31, [#allocation6], 128, 128, 8
    $region9: #{tpu_custom_call.1} parent=1 // pred_fallthru
      _
    // Predicated region
    $region10: #{tpu_custom_call.1} parent=1 // pred_check
      _
    $region11: #{tpu_custom_call.1} parent=1 // pred_check_branch
      %38 = sbr.rel (0) target = $region13
    $region12: #{tpu_custom_call.1} parent=1 // pred_region
      %39 = dma.done [#allocation3], 256
    $region13: #{tpu_custom_call.1} parent=1 // pred_fallthru
      _
    // Predicated region
    $region14: #{tpu_custom_call.1} parent=1 // pred_check
      _
    $region15: #{tpu_custom_call.1} parent=1 // pred_check_branch
      %41 = sbr.rel (0) target = $region17
    $region16: #{tpu_custom_call.1} parent=1 // pred_region
      %42 = dma.done [#allocation6], 256
    $region17: #{tpu_custom_call.1} parent=1 // pred_fallthru
      _
    %v43 = vld [vmem:[#allocation2] sm:$0xff]
    %v44 = vld [vmem:[#allocation2 + $0x8] sm:$0xff]
    %v45 = vld [vmem:[#allocation5] sm:$0xff]
    %v46 = vld [vmem:[#allocation5 + $0x8] sm:$0xff]
    %vm47 = vcmp.eq.f32.partialorder %v45, 1.0
    %vm48 = vcmp.eq.f32.partialorder %v46, 1.0
    %vm49 = vcmp.lt.f32.partialorder %v45, 1.0
    %vm50 = vcmp.lt.f32.partialorder %v46, 1.0
    %v51 = vmax.f32 %v43, 1e-09
    %v52 = vmax.f32 %v44, 1e-09
    %v53 = vmin.f32 %v51, 1.0
    %v54 = vmin.f32 %v52, 1.0
    %v55 = vsub.f32 1.0, %v53
    %v56 = vsub.f32 1.0, %v54
    %v57 = vsel %vm47, %v53, %v55
    %v58 = vsel %vm48, %v54, %v56
    %v59 = vlog2.pop %v57
    %v60 = vmul.f32 %v59, 0.6931472
    %v61 = vlog2.pop %v58
    %v62 = vmul.f32 %v61, 0.6931472
    %v63 = vsel %vm47, %v55, %v53
    %v64 = vsel %vm48, %v56, %v54
    %v65 = vsub.f32 1.0, %v45
    %v66 = vsub.f32 1.0, %v46
    %v67 = vmul.f32 %v65, %v65
    %v68 = vmul.f32 %v66, %v66
    %v69 = vmul.f32 %v67, %v67
    %v70 = vmul.f32 %v68, %v68
    %v71 = vsel %vm49, 1, 0
    %v72 = vsel %vm50, 1, 0
    %v73 = vcvt.s32.f32 %v71
    %v74 = vcvt.s32.f32 %v72
    %v75 = vmul.f32 %v69, %v73
    %v76 = vmul.f32 %v70, %v74
    %v77 = vsel %vm47, 1.0, %v75
    %v78 = vsel %vm48, 1.0, %v76
    %v79 = vmul.f32 %v63, %v63
    %v80 = vmul.f32 %v64, %v64
    %v81 = vmul.f32 %v60, %v79
    %v82 = vmul.f32 %v62, %v80
    %v83 = vmul.f32 %v81, %v77
    %v84 = vmul.f32 %v82, %v78
    %v85 = vsel %vm47, 1, 0
    %v86 = vsel %vm48, 1, 0
    %v87 = vcvt.s32.f32 %v85
    %v88 = vcvt.s32.f32 %v86
    %v89 = vadd.f32 %v83, %v84
    %90 = vst [vmem:[#allocation7] sm:$0xff] %v89
    %v91 = vadd.f32 %v87, %v88
    %92 = vst [vmem:[#allocation8] sm:$0xff] %v91
    // Predicated region
    $region18: #{tpu_custom_call.1} parent=1 // pred_check
      _
    $region19: #{tpu_custom_call.1} parent=1 // pred_check_branch
      %94 = sbr.rel (0) target = $region21
    $region20: #{tpu_custom_call.1} parent=1 // pred_region
      %s96 = ssub.s32 128, 128
      %97 = vsyncadd [#allocation4], %s96
      %s99 = sshll.u32 [#allocation7], 4
      %s100 = int_to_ptr.vmem [resolvable:$true] %s99
      %102 = dma.vmem_to_hbm [thread:$0]  %s100, 128, %s2, [#allocation4]
    $region21: #{tpu_custom_call.1} parent=1 // pred_fallthru
      _
    // Predicated region
    $region22: #{tpu_custom_call.1} parent=1 // pred_check
      _
    $region23: #{tpu_custom_call.1} parent=1 // pred_check_branch
      %104 = sbr.rel (0) target = $region25
    $region24: #{tpu_custom_call.1} parent=1 // pred_region
      %s106 = ssub.s32 128, 128
      %107 = vsyncadd [#allocation9], %s106
      %s109 = sshll.u32 [#allocation8], 4
      %s110 = int_to_ptr.vmem [resolvable:$true] %s109
      %112 = dma.vmem_to_hbm [thread:$0]  %s110, 128, %s3, [#allocation9]
    $region25: #{tpu_custom_call.1} parent=1 // pred_fallthru
      _
    // Predicated region
    $region26: #{tpu_custom_call.1} parent=1 // pred_check
      _
    $region27: #{tpu_custom_call.1} parent=1 // pred_check_branch
      %114 = sbr.rel (0) target = $region29
    $region28: #{tpu_custom_call.1} parent=1 // pred_region
      %115 = dma.done [#allocation4], 128
    $region29: #{tpu_custom_call.1} parent=1 // pred_fallthru
      _
    // Predicated region
    $region30: #{tpu_custom_call.1} parent=1 // pred_check
      _
    $region31: #{tpu_custom_call.1} parent=1 // pred_check_branch
      %117 = sbr.rel (0) target = $region33
    $region32: #{tpu_custom_call.1} parent=1 // pred_region
      %118 = dma.done [#allocation9], 128
    $region33: #{tpu_custom_call.1} parent=1 // pred_fallthru
      _
    %119 = vsyncpa [#allocation3], 1
    %120 = vsyncpa [#allocation6], 1
    %121 = vsyncpa [#allocation4], 1
    %122 = vsyncpa [#allocation9], 1

</llo_original>
